<compile_context>
chip_gen: v5e
topology: v5e:2x2
jax: 0.10.0
libtpu: 0.0.40
codegen_flags: <defaults>
</compile_context>

<pallas_src>
import jax
import jax.numpy as jnp
from jax import lax
from jax.experimental import pallas as pl
from jax.experimental.pallas import tpu as pltpu


def normalize_pad_kernel(widths_ref, x_ref, o_ref):
    """One grid step == block_n images.

    For each image k in the block:
      norm = uint8 -> float32 in [-1, 1]        (fused ToTensor + sub/div 0.5)
      cols >= w are replaced by column (w - 1)  (right edge-replicate pad)
    """
    b = pl.program_id(0)
    nb, _, _, w_max = x_ref.shape
    inv = jnp.float32(2.0 / 255.0)  # (x/255 - 0.5) / 0.5

    # Column index only along the lane (W) axis; broadcasting handles C, H.
    col = lax.broadcasted_iota(jnp.int32, (1, 1, w_max), 2)  # (1, 1, W)

    # Small static unroll over images in this block (block_n is small).
    for k in range(nb):
        w = jnp.maximum(widths_ref[b * nb + k], 1)      # int32 scalar (SMEM)
        x = x_ref[k]                                    # (C, H, W) uint8
        norm = x.astype(jnp.float32) * inv - 1.0        # (C, H, W) f32

        # Last valid column, extracted with a select + lane reduction
        # (robust: padded columns never feed the arithmetic).
        last = jnp.sum(jnp.where(col == w - 1, norm, 0.0),
                       axis=2, keepdims=True)           # (C, H, 1)

        o_ref[k] = jnp.where(col < w, norm, last).astype(o_ref.dtype)


def normalize_pad(images_u8, widths, *, out_dtype=jnp.float32, nb_max=4):
    """images_u8: (N, C, H, W) uint8 (already resized, NCHW);
    widths: (N,) int32 per-image valid widths.
    Returns the batched NormalizePAD output, (N, C, H, W) in [-1, 1]."""
    N, C, H, W = images_u8.shape

    # Images per grid step: a divisor of N, capped so that (a) VMEM stays
    # small (uint8 in + f32 out, double-buffered) and (b) the grid keeps at
    # least 2 steps when N >= 2 so v7x can use both TensorCores.
    cap = max(1, min(nb_max, N // 2)) if N >= 2 else 1
    block_n = 1
    for d in range(cap, 0, -1):
        if N % d == 0:
            block_n = d
            break

    return pl.pallas_call(
        normalize_pad_kernel,
        out_shape=jax.ShapeDtypeStruct((N, C, H, W), out_dtype),
        grid_spec=pltpu.PrefetchScalarGridSpec(
            num_scalar_prefetch=1,            # widths -> SMEM
            grid=(N // block_n,),
            in_specs=[
                pl.BlockSpec((block_n, C, H, W),
                             lambda b, widths: (b, 0, 0, 0)),
            ],
            out_specs=pl.BlockSpec((block_n, C, H, W),
                                   lambda b, widths: (b, 0, 0, 0)),
        ),
        compiler_params=pltpu.CompilerParams(
            dimension_semantics=("parallel",),
        ),
    )(widths, images_u8)


if __name__ == "__main__":
    key = jax.random.PRNGKey(0)

    # Small stand-ins for the real (3, 128, 384) plate images:
    # batch=2, C=3, H=16, W=128 (lane dim kept a multiple of 128).
    N, C, H, W = 2, 3, 16, 128
    widths = jnp.array([96, 128], dtype=jnp.int32)   # per-image resized widths

    # Host glue mimicking PIL resize output: raw uint8 pixels; columns beyond
    # each image's valid width left as zeros (the kernel never reads them).
    imgs = jax.random.randint(key, (N, C, H, W), 0, 256,
                              dtype=jnp.int32).astype(jnp.uint8)
    col = jnp.arange(W)[None, None, None, :]
    valid = col < widths[:, None, None, None]
    imgs = jnp.where(valid, imgs, jnp.uint8(0))

    out = jax.block_until_ready(normalize_pad(imgs, widths))

    # Pure-JAX reference of NormalizePAD semantics (ToTensor + normalize + pad).
    norm = imgs.astype(jnp.float32) * (2.0 / 255.0) - 1.0
    last_idx = jnp.broadcast_to((widths - 1)[:, None, None, None], (N, C, H, 1))
    last = jnp.take_along_axis(norm, last_idx, axis=3)
    ref = jnp.where(valid, norm, last)

    assert out.shape == (N, C, H, W) and out.dtype == jnp.float32
    assert jnp.allclose(out, ref, atol=1e-6), "Pallas output mismatch vs reference"
    print("KERNEL_OK")
</pallas_src>

<mosaic_0001>
module attributes {stable_mosaic.version = 11 : i64} {
  func.func @normalize_pad_kernel(%arg0: i32, %arg1: memref<2xi32, #tpu.memory_space<smem>>, %arg2: memref<1x3x16x128xi8, #tpu.memory_space<vmem>>, %arg3: memref<1x3x16x128xf32, #tpu.memory_space<vmem>>) attributes {dimension_semantics = [#tpu.dimension_semantics<parallel>], iteration_bounds = array<i64: 2>, scalar_prefetch = 1 : i64, scratch_operands = 0 : i64, tpu.core_type = #tpu.core_type<tc>, window_params = [{transform_indices = @transform_0, window_bounds = array<i64: 1, 3, 16, 128>}, {transform_indices = @transform_1, window_bounds = array<i64: 1, 3, 16, 128>}]} {
    %0 = tpu.iota {dimensions = array<i32: 2>} : vector<1x1x128xi32>
    %c1_i32 = arith.constant 1 : i32
    %1 = arith.muli %arg0, %c1_i32 : i32
    %c0_i32 = arith.constant 0 : i32
    %2 = arith.addi %1, %c0_i32 : i32
    %3 = arith.index_cast %2 : i32 to index
    %4 = memref.load %arg1[%3] : memref<2xi32, #tpu.memory_space<smem>>
    %c1_i32_0 = arith.constant 1 : i32
    %5 = arith.maxsi %4, %c1_i32_0 : i32
    %c0 = arith.constant 0 : index
    %c0_1 = arith.constant 0 : index
    %c0_2 = arith.constant 0 : index
    %c0_3 = arith.constant 0 : index
    %6 = vector.load %arg2[%c0, %c0_1, %c0_2, %c0_3] : memref<1x3x16x128xi8, #tpu.memory_space<vmem>>, vector<1x3x16x128xi8>
    %7 = vector.shape_cast %6 : vector<1x3x16x128xi8> to vector<3x16x128xi8>
    %8 = arith.uitofp %7 : vector<3x16x128xi8> to vector<3x16x128xf32>
    %cst = arith.constant 0.00784313772 : f32
    %9 = vector.broadcast %cst : f32 to vector<3x16x128xf32>
    %10 = arith.mulf %8, %9 : vector<3x16x128xf32>
    %cst_4 = arith.constant 1.000000e+00 : f32
    %11 = vector.broadcast %cst_4 : f32 to vector<3x16x128xf32>
    %12 = arith.subf %10, %11 : vector<3x16x128xf32>
    %c1_i32_5 = arith.constant 1 : i32
    %13 = arith.subi %5, %c1_i32_5 : i32
    %14 = vector.broadcast %13 : i32 to vector<1x1x128xi32>
    %15 = arith.cmpi eq, %0, %14 : vector<1x1x128xi32>
    %cst_6 = arith.constant 0.000000e+00 : f32
    %16 = vector.shape_cast %15 : vector<1x1x128xi1> to vector<1x1x128xi1>
    %17 = vector.broadcast %16 : vector<1x1x128xi1> to vector<3x16x128xi1>
    %18 = vector.broadcast %cst_6 : f32 to vector<3x16x128xf32>
    %19 = arith.select %17, %12, %18 : vector<3x16x128xi1>, vector<3x16x128xf32>
    %cst_7 = arith.constant dense<0.000000e+00> : vector<3x16xf32>
    %20 = vector.multi_reduction <add>, %19, %cst_7 [2] : vector<3x16x128xf32> to vector<3x16xf32>
    %21 = vector.shape_cast %20 : vector<3x16xf32> to vector<3x16x1xf32>
    %22 = vector.broadcast %5 : i32 to vector<1x1x128xi32>
    %23 = arith.cmpi slt, %0, %22 : vector<1x1x128xi32>
    %24 = vector.shape_cast %23 : vector<1x1x128xi1> to vector<1x1x128xi1>
    %25 = vector.broadcast %24 : vector<1x1x128xi1> to vector<3x16x128xi1>
    %26 = vector.shape_cast %21 : vector<3x16x1xf32> to vector<3x16x1xf32>
    %27 = vector.broadcast %26 : vector<3x16x1xf32> to vector<3x16x128xf32>
    %28 = arith.select %25, %12, %27 : vector<3x16x128xi1>, vector<3x16x128xf32>
    %c0_8 = arith.constant 0 : index
    %c0_9 = arith.constant 0 : index
    %c0_10 = arith.constant 0 : index
    %c0_11 = arith.constant 0 : index
    %29 = vector.load %arg3[%c0_8, %c0_9, %c0_10, %c0_11] : memref<1x3x16x128xf32, #tpu.memory_space<vmem>>, vector<1x3x16x128xf32>
    %30 = vector.shape_cast %29 : vector<1x3x16x128xf32> to vector<3x16x128xf32>
    %31 = vector.shape_cast %28 : vector<3x16x128xf32> to vector<1x3x16x128xf32>
    tpu.vector_store %arg3[%c0_8, %c0_9, %c0_10, %c0_11], %31 {strides = array<i32>} : memref<1x3x16x128xf32, #tpu.memory_space<vmem>>, vector<1x3x16x128xf32>,
    return
  }
  func.func @transform_0(%arg0: i32, %arg1: memref<2xi32, #tpu.memory_space<smem>>) -> (i32, i32, i32, i32) {
    %c0_i32 = arith.constant 0 : i32
    %c0_i32_0 = arith.constant 0 : i32
    %c0_i32_1 = arith.constant 0 : i32
    %c0_i32_2 = arith.constant 0 : i32
    return %arg0, %c0_i32, %c0_i32_0, %c0_i32_1 : i32, i32, i32, i32
  }
  func.func @transform_1(%arg0: i32, %arg1: memref<2xi32, #tpu.memory_space<smem>>) -> (i32, i32, i32, i32) {
    %c0_i32 = arith.constant 0 : i32
    %c0_i32_0 = arith.constant 0 : i32
    %c0_i32_1 = arith.constant 0 : i32
    %c0_i32_2 = arith.constant 0 : i32
    return %arg0, %c0_i32, %c0_i32_0, %c0_i32_1 : i32, i32, i32, i32
  }
}

</mosaic_0001>

<llo_original>
// kernel: tpu_custom_call.1
$region0: #{tpu_custom_call.1}
  #allocation0 [shape = 'u32[]', space=smem, size = 0x4, offset = 0x4, fixed_abs, tag = 'smem constant byte address 0x4 - core index']
  #allocation1 [shape = 'u32[72,128]{1,0:T(1,128)}', space=vmem, size = 0x9000, scoped, tag = 'internal scratch']
  #allocation2 [shape = 's32[1]{0}', space=sflag, size = 0x4, scoped, tag = 'scoped memory for tpu_custom_call.1']
  #allocation3 [shape = 'u8[512]{0}', space=smem, size = 0x200, scoped, tag = 'prefetched SMEM operand 0']
  %s0 = inlined_call_operand.hbm [shape: s32[2], index: 0, kind: input, shape index: {}]
  %s1 = inlined_call_operand.hbm [shape: u8[2,3,16,128], index: 1, kind: input, shape index: {}]
  %s2 = inlined_call_operand.hbm [shape: f32[2,3,16,128], index: 2, kind: output, shape index: {}]
  %s3 = sld [smem:[#allocation0]]
  $region41: #{tpu_custom_call.1} parent=0
    _
  %s5 = ssub.s32 1, %s3
  %s6 = scalar_select 0, %s5, %s3
  %s8 = sshll.u32 %s0, 4
  %s9 = int_to_ptr.hbm [resolvable:$true] %s8
  %11 = dma.hbm_to_smem %s9, 16, [#allocation3], [#allocation2]
  %13 = dma.done [#allocation2], 16
  %14 = sfence
  $region1: #{tpu_custom_call.1} parent=0
    #allocation4 [shape = 'u8[12288]{0}', space=vmem, size = 0x3000, scoped, tag = 'input window, operand 1']
    #allocation5 [shape = 's32[2]{0}', space=sflag, size = 0x8, scoped, tag = 'scoped memory for tpu_custom_call.1']
    #allocation6 [shape = 's32[2]{0}', space=sflag, size = 0x8, scoped, tag = 'scoped memory for tpu_custom_call.1']
    #allocation7 [shape = 'u8[49152]{0}', space=vmem, size = 0xc000, scoped, tag = 'output window, operand 0']
    %15 = vsyncpa [#allocation5], 0
    %s16 = scalar_lea.sflag [#allocation5], 1
    %17 = vsyncpa %s16, 0
    %18 = vsyncpa [#allocation6], 0
    %s19 = scalar_lea.sflag [#allocation6], 1
    %20 = vsyncpa %s19, 0
    loop: start=0, step=1, limit=4
    $region2: #{tpu_custom_call.1} parent=1 // loop_pre_header
      _
    $region3: #{tpu_custom_call.1} parent=1 // loop_header
      %s22 = sphi 0, %s26
      %p23 = scmp.ge.s32.totalorder %s22, 4
      %s32 = sphi 0, %s34
      %s35 = sphi 0, %s32
      %s36 = sphi 0, %s35
      %s52 = sphi 0, %s36
      %s58 = sphi 0, %s60
      %s61 = sphi 0, %s58
      %s62 = sphi 0, %s61
      %s78 = sphi 0, %s62
    $region4: #{tpu_custom_call.1} parent=1 // loop_header_branch
      %25 = sbr.rel (%p23) target = $region8
    $region5: #{tpu_custom_call.1} parent=1 // loop_body
      %s27 = ssub.s32 %s22, 1
      %s28 = ssub.s32 %s22, 2
      %s29 = sadd.s32 %s22, 1
      %s30 = ssub.s32 %s22, %s29
      %p31 = scmp.eq.s32.totalorder %s30, 0
      %s33 = sadd.s32 %s32, 1
      %s34 = scalar_select %p31, %s32, %s33
      %p37 = pneg %p31
      %p38 = scmp.eq.s32.totalorder %s22, 1
      %p39 = por %p37, %p38
      %p40 = scmp.ne.s32.totalorder %s32, %s35
      %p41 = scmp.eq.s32.totalorder %s22, 0
      %p42 = por %p40, %p41
      %p43 = scmp.ne.s32.totalorder %s32, %s35
      %p44 = scmp.eq.s32.totalorder %s27, 1
      %p45 = por %p43, %p44
      %p46 = scmp.ne.s32.totalorder %s35, %s36
      %p47 = scmp.eq.s32.totalorder %s27, 0
      %p48 = por %p46, %p47
      %p49 = scmp.ne.s32.totalorder %s35, %s36
      %p50 = scmp.eq.s32.totalorder %s28, 1
      %p51 = por %p49, %p50
      %p53 = scmp.ne.s32.totalorder %s36, %s52
      %p54 = scmp.eq.s32.totalorder %s28, 0
      %p55 = por %p53, %p54
      %s56 = ssub.s32 %s22, %s29
      %p57 = scmp.eq.s32.totalorder %s56, 0
      %s59 = sadd.s32 %s58, 1
      %s60 = scalar_select %p57, %s58, %s59
      %p63 = pneg %p57
      %p64 = scmp.eq.s32.totalorder %s22, 1
      %p65 = por %p63, %p64
      %p66 = scmp.ne.s32.totalorder %s58, %s61
      %p67 = scmp.eq.s32.totalorder %s22, 0
      %p68 = por %p66, %p67
      %p69 = scmp.ne.s32.totalorder %s58, %s61
      %p70 = scmp.eq.s32.totalorder %s27, 1
      %p71 = por %p69, %p70
      %p72 = scmp.ne.s32.totalorder %s61, %s62
      %p73 = scmp.eq.s32.totalorder %s27, 0
      %p74 = por %p72, %p73
      %p75 = scmp.ne.s32.totalorder %s61, %s62
      %p76 = scmp.eq.s32.totalorder %s28, 1
      %p77 = por %p75, %p76
      %p79 = scmp.ne.s32.totalorder %s62, %s78
      %p80 = scmp.eq.s32.totalorder %s28, 0
      %p81 = por %p79, %p80
      %p82 = scmp.le.s32.totalorder 1, %s22
      %p83 = scmp.lt.s32.totalorder %s22, 3
      %p84 = pnand %p82, %p83
      %p85 = pneg %p84
      // Predicated region
      $region9: #{tpu_custom_call.1} parent=5 // pred_check
        _
      $region10: #{tpu_custom_call.1} parent=5 // pred_check_branch
        %87 = sbr.rel (%p84) target = $region12
      $region11: #{tpu_custom_call.1} parent=5 // pred_region
        %s88 = ssub.s32 %s22, 1
      $region12: #{tpu_custom_call.1} parent=5 // pred_fallthru
        _
      %p89 = scmp.lt.s32.totalorder %s22, 2
      // Predicated region
      $region13: #{tpu_custom_call.1} parent=5 // pred_check
        %p90 = pneg %p89
      $region14: #{tpu_custom_call.1} parent=5 // pred_check_branch
        %92 = sbr.rel (%p90) target = $region16
      $region15: #{tpu_custom_call.1} parent=5 // pred_region
        // Predicated region
        $region17: #{tpu_custom_call.1} parent=15 // pred_check
          %p93 = pneg %p42
        $region18: #{tpu_custom_call.1} parent=15 // pred_check_branch
          %95 = sbr.rel (%p93) target = $region20
        $region19: #{tpu_custom_call.1} parent=15 // pred_region
          %s96 = sand.u32 %s32, 1
          %s97 = scalar_lea.sflag [#allocation5], %s96
          %s98 = sand.u32 %s32, 1
          %s99 = smul.addr %s98, 12
          %s100 = scalar_lea.vmem [#allocation4], %s99
          %102 = vsyncadd %s97, 0
          %s103 = smul.addr %s22, 6
          %s104 = smul.addr %s103, 2
          %s105 = scalar_lea.hbm %s1, %s104
          %s106 = sshll.u32 %s105, 4
          %s107 = int_to_ptr.hbm [resolvable:$true] %s106
          %s108 = sshll.u32 %s100, 4
          %s109 = int_to_ptr.vmem [resolvable:$true] %s108
          %114 = dma.hbm_to_vmem [thread:$0]  %s107, 192, %s109, %s97, 32, 32, 2
        $region20: #{tpu_custom_call.1} parent=15 // pred_fallthru
          _
      $region16: #{tpu_custom_call.1} parent=5 // pred_fallthru
        _
      %p115 = scmp.le.s32.totalorder 1, %s22
      %p116 = scmp.lt.s32.totalorder %s22, 3
      %p117 = pnand %p115, %p116
      %p118 = pneg %p117
      // Predicated region
      $region21: #{tpu_custom_call.1} parent=5 // pred_check
        _
      $region22: #{tpu_custom_call.1} parent=5 // pred_check_branch
        %120 = sbr.rel (%p117) target = $region24
      $region23: #{tpu_custom_call.1} parent=5 // pred_region
        %s121 = ssub.s32 %s22, 1
        %s122 = sand.u32 %s35, 1
        %s123 = scalar_lea.sflag [#allocation5], %s122
        %s124 = sand.u32 %s35, 1
        %s125 = smul.addr %s124, 12
        %s126 = scalar_lea.vmem [#allocation4], %s125
        // Predicated region
        $region25: #{tpu_custom_call.1} parent=23 // pred_check
          %p127 = pneg %p48
        $region26: #{tpu_custom_call.1} parent=23 // pred_check_branch
          %129 = sbr.rel (%p127) target = $region28
        $region27: #{tpu_custom_call.1} parent=23 // pred_region
          %131 = dma.done %s123, 192
        $region28: #{tpu_custom_call.1} parent=23 // pred_fallthru
          _
        %s132 = sand.u32 %s35, 1
        %s133 = scalar_lea.sflag [#allocation5], %s132
        %s134 = sand.u32 %s35, 1
        %s135 = smul.addr %s134, 12
        %s136 = scalar_lea.vmem [#allocation4], %s135
        %p137 = pneg %p48
        %p138 = pneg %p45
        %p139 = pneg %p74
        %p140 = pneg %p71
        %s141 = sand.u32 %s61, 1
        %s142 = scalar_lea.sflag [#allocation6], %s141
        %s143 = sand.u32 %s61, 1
        %s144 = smul.addr %s143, 48
        %s145 = scalar_lea.vmem [#allocation7], %s144
        %v146 = vlaneseq
        %v147 = vand.u32 %v146, 127
        %s148 = sld [smem:[#allocation3 + %s27]]
        %p149 = scmp.gt.s32.totalorder %s148, 1
        %s150 = scalar_select %p149, %s148, 1
        %v151 = vld [vmem:[%s126] sm:$0x3]
        %v152 = vld [vmem:[%s126 + $0x2] sm:$0x3]
        %v153 = vld [vmem:[%s126 + $0x4] sm:$0x3]
        %v154 = vld [vmem:[%s126 + $0x6] sm:$0x3]
        %v155 = vld [vmem:[%s126 + $0x8] sm:$0x3]
        %v156 = vld [vmem:[%s126 + $0xa] sm:$0x3]
        %v157 = vunpack.c.0.s8 %v151
        %v158 = vunpack.c.0.s8 %v152
        %v159 = vunpack.c.0.s8 %v153
        %v160 = vunpack.c.0.s8 %v154
        %v161 = vunpack.c.0.s8 %v155
        %v162 = vunpack.c.0.s8 %v156
        %v163 = vand.u32 %v157, 255
        %v164 = vand.u32 %v158, 255
        %v165 = vand.u32 %v159, 255
        %v166 = vand.u32 %v160, 255
        %v167 = vand.u32 %v161, 255
        %v168 = vand.u32 %v162, 255
        %v169 = vcvt.s32.f32 %v163
        %v170 = vcvt.s32.f32 %v164
        %v171 = vcvt.s32.f32 %v165
        %v172 = vcvt.s32.f32 %v166
        %v173 = vcvt.s32.f32 %v167
        %v174 = vcvt.s32.f32 %v168
        %v175 = vmul.f32 %v169, 0.007843138
        %v176 = vmul.f32 %v170, 0.007843138
        %v177 = vmul.f32 %v171, 0.007843138
        %v178 = vmul.f32 %v172, 0.007843138
        %v179 = vmul.f32 %v173, 0.007843138
        %v180 = vmul.f32 %v174, 0.007843138
        %v181 = vsub.f32 %v175, 1.0
        %v182 = vsub.f32 %v176, 1.0
        %v183 = vsub.f32 %v177, 1.0
        %v184 = vsub.f32 %v178, 1.0
        %v185 = vsub.f32 %v179, 1.0
        %v186 = vsub.f32 %v180, 1.0
        %s187 = ssub.s32 %s150, 1
        %v188 = vstv %s187
        %vm189 = vcmp.eq.s32.totalorder %v147, %v188
        %v190 = vsel %vm189, 1, 0
        %vm191 = vcmp.eq.s32.totalorder %v190, 1
        %v192 = vsel %vm191, %v181, 0.0
        %v193 = vsel %vm191, %v182, 0.0
        %v194 = vsel %vm191, %v183, 0.0
        %v195 = vsel %vm191, %v184, 0.0
        %v196 = vsel %vm191, %v185, 0.0
        %v197 = vsel %vm191, %v186, 0.0
        %198 = vadd.xlane.f32.xlu0 %v192
        %v199 = vpop.xlane.xlu0 %198
        %200 = vadd.xlane.f32.xlu0 %v193
        %v201 = vpop.xlane.xlu0 %200
        %202 = vadd.xlane.f32.xlu0 %v194
        %v203 = vpop.xlane.xlu0 %202
        %204 = vadd.xlane.f32.xlu0 %v195
        %v205 = vpop.xlane.xlu0 %204
        %206 = vadd.xlane.f32.xlu0 %v196
        %v207 = vpop.xlane.xlu0 %206
        %208 = vadd.xlane.f32.xlu0 %v197
        %v209 = vpop.xlane.xlu0 %208
        %v210 = vstv %s150
        %vm211 = vcmp.lt.s32.totalorder %v147, %v210
        %v212 = vsel %vm211, 1, 0
        %vm213 = vcmp.eq.s32.totalorder %v212, 1
        %v214 = vsel %vm213, %v181, %v199
        %v215 = vsel %vm213, %v182, %v201
        %v216 = vsel %vm213, %v183, %v203
        %v217 = vsel %vm213, %v184, %v205
        %v218 = vsel %vm213, %v185, %v207
        %v219 = vsel %vm213, %v186, %v209
        %220 = vst [vmem:[%s145] sm:$0xff] %v214
        %221 = vst [vmem:[%s145 + $0x8] sm:$0xff] %v215
        %222 = vst [vmem:[%s145 + $0x10] sm:$0xff] %v216
        %223 = vst [vmem:[%s145 + $0x18] sm:$0xff] %v217
        %224 = vst [vmem:[%s145 + $0x20] sm:$0xff] %v218
        %225 = vst [vmem:[%s145 + $0x28] sm:$0xff] %v219
        %s226 = sand.u32 %s61, 1
        %s227 = scalar_lea.sflag [#allocation6], %s226
        %s228 = sand.u32 %s61, 1
        %s229 = smul.addr %s228, 48
        %s230 = scalar_lea.vmem [#allocation7], %s229
        // Predicated region
        $region29: #{tpu_custom_call.1} parent=23 // pred_check
          %p231 = pneg %p71
        $region30: #{tpu_custom_call.1} parent=23 // pred_check_branch
          %233 = sbr.rel (%p231) target = $region32
        $region31: #{tpu_custom_call.1} parent=23 // pred_region
          %235 = vsyncadd %s227, 0
          %s236 = smul.addr %s27, 6
          %s237 = smul.addr %s236, 8
          %s238 = scalar_lea.hbm %s2, %s237
          %s239 = sshll.u32 %s230, 4
          %s240 = int_to_ptr.vmem [resolvable:$true] %s239
          %s241 = sshll.u32 %s238, 4
          %s242 = int_to_ptr.hbm [resolvable:$true] %s241
          %247 = dma.vmem_to_hbm [thread:$0]  %s240, 768, %s242, %s227, 128, 128, 8
        $region32: #{tpu_custom_call.1} parent=23 // pred_fallthru
          _
      $region24: #{tpu_custom_call.1} parent=5 // pred_fallthru
        _
      %p248 = scmp.le.s32.totalorder 2, %s22
      // Predicated region
      $region33: #{tpu_custom_call.1} parent=5 // pred_check
        %p249 = pneg %p248
      $region34: #{tpu_custom_call.1} parent=5 // pred_check_branch
        %251 = sbr.rel (%p249) target = $region36
      $region35: #{tpu_custom_call.1} parent=5 // pred_region
        %s252 = ssub.s32 %s22, 2
        // Predicated region
        $region37: #{tpu_custom_call.1} parent=35 // pred_check
          %p253 = pneg %p77
        $region38: #{tpu_custom_call.1} parent=35 // pred_check_branch
          %255 = sbr.rel (%p253) target = $region40
        $region39: #{tpu_custom_call.1} parent=35 // pred_region
          %s256 = sand.u32 %s62, 1
          %s257 = scalar_lea.sflag [#allocation6], %s256
          %s258 = sand.u32 %s62, 1
          %s259 = smul.addr %s258, 48
          %s260 = scalar_lea.vmem [#allocation7], %s259
          %262 = dma.done %s257, 768
        $region40: #{tpu_custom_call.1} parent=35 // pred_fallthru
          _
      $region36: #{tpu_custom_call.1} parent=5 // pred_fallthru
        _
    $region6: #{tpu_custom_call.1} parent=1 // loop_footer
      %s26 = sadd.s32 1, %s22
    $region7: #{tpu_custom_call.1} parent=1 // loop_footer_branch
      %21 = sbr.rel target = $region3
    $region8: #{tpu_custom_call.1} parent=1 // loop_exit
      _
    %263 = vsyncpa [#allocation5], 1
    %s264 = scalar_lea.sflag [#allocation5], 1
    %265 = vsyncpa %s264, 1
    %266 = vsyncpa [#allocation6], 1
    %s267 = scalar_lea.sflag [#allocation6], 1
    %268 = vsyncpa %s267, 1

</llo_original>
